<compile_context>
chip_gen: v5e
topology: v5e:2x2
jax: 0.10.0
libtpu: 0.0.40
codegen_flags: <defaults>
</compile_context>

<pallas_src>
import functools

import jax
import jax.numpy as jnp
from jax.experimental import pallas as pl
from jax.experimental.pallas import tpu as pltpu


def _round_up(n, m):
    return ((n + m - 1) // m) * m


def _mlp_kernel(x_ref, w0_ref, w1_ref, w2_ref, w3_ref, b_ref, o_ref,
                *, bias_slices):
    """Fused 4-layer MLP: 3x (Linear + ReLU) then Linear + Sigmoid.

    One batch tile per grid step.  Weights / concatenated biases are resident
    VMEM blocks (constant index maps); x is streamed f32 and cast to bf16 on
    the VPU; matmuls accumulate in f32 on the MXU; the final sigmoid is written
    at the real output width (no lane padding).
    """
    (o0, d0), (o1, d1), (o2, d2), (o3, d3) = bias_slices

    h = x_ref[...].astype(jnp.bfloat16)          # in-kernel cast, free on VPU

    a = jnp.dot(h, w0_ref[...], preferred_element_type=jnp.float32)
    a = a + b_ref[:, o0:o0 + d0]
    h = jnp.maximum(a, 0.0).astype(jnp.bfloat16)

    a = jnp.dot(h, w1_ref[...], preferred_element_type=jnp.float32)
    a = a + b_ref[:, o1:o1 + d1]
    h = jnp.maximum(a, 0.0).astype(jnp.bfloat16)

    a = jnp.dot(h, w2_ref[...], preferred_element_type=jnp.float32)
    a = a + b_ref[:, o2:o2 + d2]
    h = jnp.maximum(a, 0.0).astype(jnp.bfloat16)

    logits = jnp.dot(h, w3_ref[...], preferred_element_type=jnp.float32)
    logits = logits + b_ref[:, o3:o3 + d3]
    o_ref[...] = jax.nn.sigmoid(logits).astype(o_ref.dtype)


def constraint_screening_forward(x, params, *, batch_tile=2048):
    """ConstraintScreeningNN forward pass via a fused Pallas TPU kernel.

    Args:
      x: (batch, input_dim) float32.
      params: list of (W, b) with W of shape (in_dim, out_dim), b of shape (out_dim,).
      batch_tile: rows of the batch per grid step (sweep 1024-4096; clamped so
                  any batch size works and so there are >=2 grid steps when possible).
    Returns:
      (batch, num_constraints) float32 sigmoid probabilities.
    """
    (w0, b0), (w1, b1), (w2, b2), (w3, b3) = params
    batch, input_dim = x.shape
    h0, h1, h2 = w0.shape[1], w1.shape[1], w2.shape[1]
    num_constraints = w3.shape[1]

    # Resident bf16 weights (tiny, ~52 KB total).
    w0b, w1b, w2b, w3b = (w.astype(jnp.bfloat16) for w in (w0, w1, w2, w3))

    # Concatenate biases into one lane-aligned (1, total) f32 row; each bias
    # starts at a multiple of 128 lanes so in-kernel static slices need no
    # cross-tile lane shifts.
    out_dims = (h0, h1, h2, num_constraints)
    offs, off = [], 0
    for d in out_dims:
        offs.append(off)
        off += _round_up(d, 128)
    b_width = off
    b_parts = [jnp.pad(b.astype(jnp.float32), (0, _round_up(d, 128) - d))
               for b, d in zip((b0, b1, b2, b3), out_dims)]
    b_cat = jnp.concatenate(b_parts).reshape(1, b_width)
    bias_slices = tuple(zip(offs, out_dims))

    # --- Batch tiling.  Big tiles amortize the ~0.35us/step fixed cost; keep
    # >=2 grid steps when the batch allows it so v7x's second TC gets work. ---
    batch_r8 = _round_up(batch, 8)
    bt = max(8, _round_up(min(batch_tile, batch), 8))
    bt = min(bt, batch_r8)
    if batch_r8 >= 16:
        bt = min(bt, _round_up(pl.cdiv(batch_r8, 2), 8))
    n_steps = pl.cdiv(batch_r8, bt)
    bt = _round_up(pl.cdiv(batch_r8, n_steps), 8)   # re-balance -> minimal row padding
    batch_pad = bt * n_steps
    if batch_pad != batch:
        x = jnp.pad(x, ((0, batch_pad - batch), (0, 0)))

    def x_map(i):
        return (i, 0)

    def rep_map(i):     # resident blocks: same block every step (revisit-elided)
        return (0, 0)

    # Advisory cost hint for XLA scheduling around this mem/overhead-bound call.
    flops = 2 * batch_pad * (input_dim * h0 + h0 * h1 + h1 * h2 + h2 * num_constraints)
    bytes_accessed = (x.size * 4 + batch_pad * num_constraints * 4
                      + (w0b.size + w1b.size + w2b.size + w3b.size) * 2
                      + b_cat.size * 4)
    cost = pl.CostEstimate(flops=flops,
                           transcendentals=batch_pad * num_constraints,
                           bytes_accessed=bytes_accessed)

    kernel = functools.partial(_mlp_kernel, bias_slices=bias_slices)

    out_padded = pl.pallas_call(
        kernel,
        out_shape=jax.ShapeDtypeStruct((batch_pad, num_constraints), jnp.float32),
        grid_spec=pltpu.PrefetchScalarGridSpec(
            num_scalar_prefetch=0,
            grid=(n_steps,),
            in_specs=[
                pl.BlockSpec((bt, input_dim), x_map),
                pl.BlockSpec(w0b.shape, rep_map),
                pl.BlockSpec(w1b.shape, rep_map),
                pl.BlockSpec(w2b.shape, rep_map),
                pl.BlockSpec(w3b.shape, rep_map),
                pl.BlockSpec((1, b_width), rep_map),
            ],
            out_specs=pl.BlockSpec((bt, num_constraints), x_map),
        ),
        compiler_params=pltpu.CompilerParams(
            dimension_semantics=("parallel",),
            vmem_limit_bytes=32 * 1024 * 1024),
        cost_estimate=cost,
    )(x, w0b, w1b, w2b, w3b, b_cat)

    # Drop padded batch rows (deterministic sigmoid-of-bias values, never valid data).
    return out_padded[:batch]


def init_params(key, input_dim, num_constraints, hidden_dims=(64, 128, 64)):
    """Deterministic init mimicking nn.Linear's U(-1/sqrt(fan_in), 1/sqrt(fan_in))."""
    dims = [input_dim, *hidden_dims, num_constraints]
    params = []
    for i in range(len(dims) - 1):
        fan_in, fan_out = dims[i], dims[i + 1]
        key, kw, kb = jax.random.split(key, 3)
        bound = 1.0 / (fan_in ** 0.5)
        # Stored as (in, out) == PyTorch weight.T
        w = jax.random.uniform(kw, (fan_in, fan_out), jnp.float32, -bound, bound)
        b = jax.random.uniform(kb, (fan_out,), jnp.float32, -bound, bound)
        params.append((w, b))
    return params


def reference_forward(x, params):
    """Pure-JAX f32 reference of the same forward pass."""
    h = x
    n = len(params)
    for i, (w, b) in enumerate(params):
        h = h @ w + b
        h = jnp.maximum(h, 0.0) if i < n - 1 else jax.nn.sigmoid(h)
    return h


if __name__ == "__main__":
    input_dim = 32
    num_constraints = 16

    key = jax.random.PRNGKey(0)
    key, kx1, kx2 = jax.random.split(key, 3)
    params = init_params(key, input_dim, num_constraints)

    # Check 1: batch 16 with default tile -> clamps to two 8-row grid steps
    # (exercises the >=2-step megacore clamp), no row padding.
    batch1 = 16
    x1 = jax.random.normal(kx1, (batch1, input_dim), jnp.float32)
    fwd1 = jax.jit(functools.partial(constraint_screening_forward, batch_tile=2048))
    out1 = jax.block_until_ready(fwd1(x1, params))
    ref1 = reference_forward(x1, params)
    assert out1.shape == (batch1, num_constraints)
    # bf16 matmul inputs -> looser tolerance vs f32 reference (sigmoid-bounded).
    assert jnp.allclose(out1, ref1, atol=2e-2, rtol=2e-2), "mismatch vs reference (batch=16)"

    # Check 2: batch 24 with tile 16 -> row padding + 2-step parallel grid.
    batch2 = 24
    x2 = jax.random.normal(kx2, (batch2, input_dim), jnp.float32)
    fwd2 = jax.jit(functools.partial(constraint_screening_forward, batch_tile=16))
    out2 = jax.block_until_ready(fwd2(x2, params))
    ref2 = reference_forward(x2, params)
    assert out2.shape == (batch2, num_constraints)
    assert jnp.allclose(out2, ref2, atol=2e-2, rtol=2e-2), "mismatch vs reference (batch=24)"

    print("KERNEL_OK")
</pallas_src>

<mosaic_0001>
module attributes {stable_mosaic.version = 11 : i64} {
  func.func @_mlp_kernel(%arg0: i32, %arg1: memref<8x32xf32, #tpu.memory_space<vmem>>, %arg2: memref<32x64xbf16, #tpu.memory_space<vmem>>, %arg3: memref<64x128xbf16, #tpu.memory_space<vmem>>, %arg4: memref<128x64xbf16, #tpu.memory_space<vmem>>, %arg5: memref<64x16xbf16, #tpu.memory_space<vmem>>, %arg6: memref<1x512xf32, #tpu.memory_space<vmem>>, %arg7: memref<8x16xf32, #tpu.memory_space<vmem>>) attributes {dimension_semantics = [#tpu.dimension_semantics<parallel>], iteration_bounds = array<i64: 2>, scalar_prefetch = 0 : i64, scratch_operands = 0 : i64, tpu.core_type = #tpu.core_type<tc>, window_params = [{transform_indices = @transform_0, window_bounds = array<i64: 8, 32>}, {pipeline_mode = #tpu.pipeline_mode<synchronous>, transform_indices = @transform_1, window_bounds = array<i64: 32, 64>}, {pipeline_mode = #tpu.pipeline_mode<synchronous>, transform_indices = @transform_2, window_bounds = array<i64: 64, 128>}, {pipeline_mode = #tpu.pipeline_mode<synchronous>, transform_indices = @transform_3, window_bounds = array<i64: 128, 64>}, {pipeline_mode = #tpu.pipeline_mode<synchronous>, transform_indices = @transform_4, window_bounds = array<i64: 64, 16>}, {pipeline_mode = #tpu.pipeline_mode<synchronous>, transform_indices = @transform_5, window_bounds = array<i64: 1, 512>}, {transform_indices = @transform_6, window_bounds = array<i64: 8, 16>}]} {
    %c0 = arith.constant 0 : index
    %c0_0 = arith.constant 0 : index
    %0 = vector.load %arg1[%c0, %c0_0] : memref<8x32xf32, #tpu.memory_space<vmem>>, vector<8x32xf32>
    %1 = arith.truncf %0 : vector<8x32xf32> to vector<8x32xbf16>
    %c0_1 = arith.constant 0 : index
    %c0_2 = arith.constant 0 : index
    %2 = vector.load %arg2[%c0_1, %c0_2] : memref<32x64xbf16, #tpu.memory_space<vmem>>, vector<32x64xbf16>
    %cst = arith.constant dense<0.000000e+00> : vector<8x64xf32>
    %3 = tpu.matmul %1, %2, %cst {dimension_numbers = #tpu.dot_dimension_numbers<[1], [0], [0], [1], [0, 0, 1, 1], [], []>} : vector<8x32xbf16>, vector<32x64xbf16>, vector<8x64xf32> -> vector<8x64xf32>
    %c0_3 = arith.constant 0 : index
    %c0_4 = arith.constant 0 : index
    %4 = vector.load %arg6[%c0_3, %c0_4] : memref<1x512xf32, #tpu.memory_space<vmem>>, vector<1x64xf32>
    %5 = vector.broadcast %4 : vector<1x64xf32> to vector<8x64xf32>
    %6 = arith.addf %3, %5 : vector<8x64xf32>
    %cst_5 = arith.constant 0.000000e+00 : f32
    %7 = vector.broadcast %cst_5 : f32 to vector<8x64xf32>
    %8 = arith.maximumf %6, %7 : vector<8x64xf32>
    %9 = arith.truncf %8 : vector<8x64xf32> to vector<8x64xbf16>
    %c0_6 = arith.constant 0 : index
    %c0_7 = arith.constant 0 : index
    %10 = vector.load %arg3[%c0_6, %c0_7] : memref<64x128xbf16, #tpu.memory_space<vmem>>, vector<64x128xbf16>
    %cst_8 = arith.constant dense<0.000000e+00> : vector<8x128xf32>
    %11 = tpu.matmul %9, %10, %cst_8 {dimension_numbers = #tpu.dot_dimension_numbers<[1], [0], [0], [1], [0, 0, 1, 1], [], []>} : vector<8x64xbf16>, vector<64x128xbf16>, vector<8x128xf32> -> vector<8x128xf32>
    %c0_9 = arith.constant 0 : index
    %c128 = arith.constant 128 : index
    %12 = vector.load %arg6[%c0_9, %c128] : memref<1x512xf32, #tpu.memory_space<vmem>>, vector<1x128xf32>
    %13 = vector.broadcast %12 : vector<1x128xf32> to vector<8x128xf32>
    %14 = arith.addf %11, %13 : vector<8x128xf32>
    %cst_10 = arith.constant 0.000000e+00 : f32
    %15 = vector.broadcast %cst_10 : f32 to vector<8x128xf32>
    %16 = arith.maximumf %14, %15 : vector<8x128xf32>
    %17 = arith.truncf %16 : vector<8x128xf32> to vector<8x128xbf16>
    %c0_11 = arith.constant 0 : index
    %c0_12 = arith.constant 0 : index
    %18 = vector.load %arg4[%c0_11, %c0_12] : memref<128x64xbf16, #tpu.memory_space<vmem>>, vector<128x64xbf16>
    %cst_13 = arith.constant dense<0.000000e+00> : vector<8x64xf32>
    %19 = tpu.matmul %17, %18, %cst_13 {dimension_numbers = #tpu.dot_dimension_numbers<[1], [0], [0], [1], [0, 0, 1, 1], [], []>} : vector<8x128xbf16>, vector<128x64xbf16>, vector<8x64xf32> -> vector<8x64xf32>
    %c0_14 = arith.constant 0 : index
    %c256 = arith.constant 256 : index
    %20 = vector.load %arg6[%c0_14, %c256] : memref<1x512xf32, #tpu.memory_space<vmem>>, vector<1x64xf32>
    %21 = vector.broadcast %20 : vector<1x64xf32> to vector<8x64xf32>
    %22 = arith.addf %19, %21 : vector<8x64xf32>
    %cst_15 = arith.constant 0.000000e+00 : f32
    %23 = vector.broadcast %cst_15 : f32 to vector<8x64xf32>
    %24 = arith.maximumf %22, %23 : vector<8x64xf32>
    %25 = arith.truncf %24 : vector<8x64xf32> to vector<8x64xbf16>
    %c0_16 = arith.constant 0 : index
    %c0_17 = arith.constant 0 : index
    %26 = vector.load %arg5[%c0_16, %c0_17] : memref<64x16xbf16, #tpu.memory_space<vmem>>, vector<64x16xbf16>
    %cst_18 = arith.constant dense<0.000000e+00> : vector<8x16xf32>
    %27 = tpu.matmul %25, %26, %cst_18 {dimension_numbers = #tpu.dot_dimension_numbers<[1], [0], [0], [1], [0, 0, 1, 1], [], []>} : vector<8x64xbf16>, vector<64x16xbf16>, vector<8x16xf32> -> vector<8x16xf32>
    %c0_19 = arith.constant 0 : index
    %c384 = arith.constant 384 : index
    %28 = vector.load %arg6[%c0_19, %c384] : memref<1x512xf32, #tpu.memory_space<vmem>>, vector<1x16xf32>
    %29 = vector.broadcast %28 : vector<1x16xf32> to vector<8x16xf32>
    %30 = arith.addf %27, %29 : vector<8x16xf32>
    %31 = arith.negf %30 : vector<8x16xf32>
    %32 = math.exp %31 : vector<8x16xf32>
    %cst_20 = arith.constant 1.000000e+00 : f32
    %33 = vector.broadcast %cst_20 : f32 to vector<8x16xf32>
    %34 = arith.addf %33, %32 : vector<8x16xf32>
    %35 = arith.divf %33, %34 : vector<8x16xf32>
    %c0_21 = arith.constant 0 : index
    %c0_22 = arith.constant 0 : index
    %36 = vector.load %arg7[%c0_21, %c0_22] : memref<8x16xf32, #tpu.memory_space<vmem>>, vector<8x16xf32>
    tpu.vector_store %arg7[%c0_21, %c0_22], %35 {strides = array<i32>} : memref<8x16xf32, #tpu.memory_space<vmem>>, vector<8x16xf32>,
    return
  }
  func.func @transform_0(%arg0: i32) -> (i32, i32) {
    %c0_i32 = arith.constant 0 : i32
    %c0_i32_0 = arith.constant 0 : i32
    return %arg0, %c0_i32 : i32, i32
  }
  func.func @transform_1(%arg0: i32) -> (i32, i32) {
    %c0_i32 = arith.constant 0 : i32
    %c0_i32_0 = arith.constant 0 : i32
    %c0_i32_1 = arith.constant 0 : i32
    return %c0_i32, %c0_i32_0 : i32, i32
  }
  func.func @transform_2(%arg0: i32) -> (i32, i32) {
    %c0_i32 = arith.constant 0 : i32
    %c0_i32_0 = arith.constant 0 : i32
    %c0_i32_1 = arith.constant 0 : i32
    return %c0_i32, %c0_i32_0 : i32, i32
  }
  func.func @transform_3(%arg0: i32) -> (i32, i32) {
    %c0_i32 = arith.constant 0 : i32
    %c0_i32_0 = arith.constant 0 : i32
    %c0_i32_1 = arith.constant 0 : i32
    return %c0_i32, %c0_i32_0 : i32, i32
  }
  func.func @transform_4(%arg0: i32) -> (i32, i32) {
    %c0_i32 = arith.constant 0 : i32
    %c0_i32_0 = arith.constant 0 : i32
    %c0_i32_1 = arith.constant 0 : i32
    return %c0_i32, %c0_i32_0 : i32, i32
  }
  func.func @transform_5(%arg0: i32) -> (i32, i32) {
    %c0_i32 = arith.constant 0 : i32
    %c0_i32_0 = arith.constant 0 : i32
    %c0_i32_1 = arith.constant 0 : i32
    return %c0_i32, %c0_i32_0 : i32, i32
  }
  func.func @transform_6(%arg0: i32) -> (i32, i32) {
    %c0_i32 = arith.constant 0 : i32
    %c0_i32_0 = arith.constant 0 : i32
    return %arg0, %c0_i32 : i32, i32
  }
}

</mosaic_0001>

<llo_original>
// kernel: constraint_screening_forward.1
$region0: #{constraint_screening_forward.1}
  #allocation0 [shape = 'u32[]', space=smem, size = 0x4, offset = 0x4, fixed_abs, tag = 'smem constant byte address 0x4 - core index']
  #allocation1 [shape = 'u32[72,128]{1,0:T(1,128)}', space=vmem, size = 0x9000, scoped, tag = 'internal scratch']
  %s0 = inlined_call_operand.vmem [shape: f32[16,32], index: 0, kind: input, shape index: {}]
  %s1 = inlined_call_operand.vmem [shape: bf16[32,64], index: 1, kind: input, shape index: {}]
  %s2 = inlined_call_operand.vmem [shape: bf16[64,128], index: 2, kind: input, shape index: {}]
  %s3 = inlined_call_operand.vmem [shape: bf16[128,64], index: 3, kind: input, shape index: {}]
  %s4 = inlined_call_operand.vmem [shape: bf16[64,16], index: 4, kind: input, shape index: {}]
  %s5 = inlined_call_operand.vmem [shape: f32[1,512], index: 5, kind: input, shape index: {}]
  %s6 = inlined_call_operand.hbm [shape: f32[16,16], index: 6, kind: output, shape index: {}]
  %s7 = sld [smem:[#allocation0]]
  $region57: #{constraint_screening_forward.1} parent=0
    _
  %s9 = ssub.s32 1, %s7
  %s10 = scalar_select 0, %s9, %s7
  $region1: #{constraint_screening_forward.1} parent=0
    #allocation2 [shape = 'u8[8192]{0}', space=vmem, size = 0x2000, scoped, tag = 'output window, operand 0']
    #allocation3 [shape = 's32[2]{0}', space=sflag, size = 0x8, scoped, tag = 'scoped memory for constraint_screening_forward.1']
    %11 = vsyncpa [#allocation3], 0
    %s12 = scalar_lea.sflag [#allocation3], 1
    %13 = vsyncpa %s12, 0
    loop: start=0, step=1, limit=4
    $region2: #{constraint_screening_forward.1} parent=1 // loop_pre_header
      _
    $region3: #{constraint_screening_forward.1} parent=1 // loop_header
      %s15 = sphi 0, %s19
      %p16 = scmp.ge.s32.totalorder %s15, 4
      %s25 = sphi 0, %s27
      %s28 = sphi 0, %s25
      %s29 = sphi 0, %s28
      %s45 = sphi 0, %s29
      %s49 = sphi 0, %s49
      %s51 = sphi 0, %s49
      %s52 = sphi 0, %s51
      %s66 = sphi 0, %s52
      %s70 = sphi 0, %s70
      %s72 = sphi 0, %s70
      %s73 = sphi 0, %s72
      %s87 = sphi 0, %s73
      %s91 = sphi 0, %s91
      %s93 = sphi 0, %s91
      %s94 = sphi 0, %s93
      %s108 = sphi 0, %s94
      %s112 = sphi 0, %s112
      %s114 = sphi 0, %s112
      %s115 = sphi 0, %s114
      %s129 = sphi 0, %s115
      %s133 = sphi 0, %s133
      %s135 = sphi 0, %s133
      %s136 = sphi 0, %s135
      %s150 = sphi 0, %s136
      %s156 = sphi 0, %s158
      %s159 = sphi 0, %s156
      %s160 = sphi 0, %s159
      %s176 = sphi 0, %s160
    $region4: #{constraint_screening_forward.1} parent=1 // loop_header_branch
      %18 = sbr.rel (%p16) target = $region8
    $region5: #{constraint_screening_forward.1} parent=1 // loop_body
      %s20 = ssub.s32 %s15, 1
      %s21 = ssub.s32 %s15, 2
      %s22 = sadd.s32 %s15, 1
      %s23 = ssub.s32 %s15, %s22
      %p24 = scmp.eq.s32.totalorder %s23, 0
      %s26 = sadd.s32 %s25, 1
      %s27 = scalar_select %p24, %s25, %s26
      %p30 = pneg %p24
      %p31 = scmp.eq.s32.totalorder %s15, 1
      %p32 = por %p30, %p31
      %p33 = scmp.ne.s32.totalorder %s25, %s28
      %p34 = scmp.eq.s32.totalorder %s15, 0
      %p35 = por %p33, %p34
      %p36 = scmp.ne.s32.totalorder %s25, %s28
      %p37 = scmp.eq.s32.totalorder %s20, 1
      %p38 = por %p36, %p37
      %p39 = scmp.ne.s32.totalorder %s28, %s29
      %p40 = scmp.eq.s32.totalorder %s20, 0
      %p41 = por %p39, %p40
      %p42 = scmp.ne.s32.totalorder %s28, %s29
      %p43 = scmp.eq.s32.totalorder %s21, 1
      %p44 = por %p42, %p43
      %p46 = scmp.ne.s32.totalorder %s29, %s45
      %p47 = scmp.eq.s32.totalorder %s21, 0
      %p48 = por %p46, %p47
      %s50 = sadd.s32 %s49, 1
      %p53 = scmp.eq.s32.totalorder %s15, 1
      %p54 = scmp.ne.s32.totalorder %s49, %s51
      %p55 = scmp.eq.s32.totalorder %s15, 0
      %p56 = por %p54, %p55
      %p57 = scmp.ne.s32.totalorder %s49, %s51
      %p58 = scmp.eq.s32.totalorder %s20, 1
      %p59 = por %p57, %p58
      %p60 = scmp.ne.s32.totalorder %s51, %s52
      %p61 = scmp.eq.s32.totalorder %s20, 0
      %p62 = por %p60, %p61
      %p63 = scmp.ne.s32.totalorder %s51, %s52
      %p64 = scmp.eq.s32.totalorder %s21, 1
      %p65 = por %p63, %p64
      %p67 = scmp.ne.s32.totalorder %s52, %s66
      %p68 = scmp.eq.s32.totalorder %s21, 0
      %p69 = por %p67, %p68
      %s71 = sadd.s32 %s70, 1
      %p74 = scmp.eq.s32.totalorder %s15, 1
      %p75 = scmp.ne.s32.totalorder %s70, %s72
      %p76 = scmp.eq.s32.totalorder %s15, 0
      %p77 = por %p75, %p76
      %p78 = scmp.ne.s32.totalorder %s70, %s72
      %p79 = scmp.eq.s32.totalorder %s20, 1
      %p80 = por %p78, %p79
      %p81 = scmp.ne.s32.totalorder %s72, %s73
      %p82 = scmp.eq.s32.totalorder %s20, 0
      %p83 = por %p81, %p82
      %p84 = scmp.ne.s32.totalorder %s72, %s73
      %p85 = scmp.eq.s32.totalorder %s21, 1
      %p86 = por %p84, %p85
      %p88 = scmp.ne.s32.totalorder %s73, %s87
      %p89 = scmp.eq.s32.totalorder %s21, 0
      %p90 = por %p88, %p89
      %s92 = sadd.s32 %s91, 1
      %p95 = scmp.eq.s32.totalorder %s15, 1
      %p96 = scmp.ne.s32.totalorder %s91, %s93
      %p97 = scmp.eq.s32.totalorder %s15, 0
      %p98 = por %p96, %p97
      %p99 = scmp.ne.s32.totalorder %s91, %s93
      %p100 = scmp.eq.s32.totalorder %s20, 1
      %p101 = por %p99, %p100
      %p102 = scmp.ne.s32.totalorder %s93, %s94
      %p103 = scmp.eq.s32.totalorder %s20, 0
      %p104 = por %p102, %p103
      %p105 = scmp.ne.s32.totalorder %s93, %s94
      %p106 = scmp.eq.s32.totalorder %s21, 1
      %p107 = por %p105, %p106
      %p109 = scmp.ne.s32.totalorder %s94, %s108
      %p110 = scmp.eq.s32.totalorder %s21, 0
      %p111 = por %p109, %p110
      %s113 = sadd.s32 %s112, 1
      %p116 = scmp.eq.s32.totalorder %s15, 1
      %p117 = scmp.ne.s32.totalorder %s112, %s114
      %p118 = scmp.eq.s32.totalorder %s15, 0
      %p119 = por %p117, %p118
      %p120 = scmp.ne.s32.totalorder %s112, %s114
      %p121 = scmp.eq.s32.totalorder %s20, 1
      %p122 = por %p120, %p121
      %p123 = scmp.ne.s32.totalorder %s114, %s115
      %p124 = scmp.eq.s32.totalorder %s20, 0
      %p125 = por %p123, %p124
      %p126 = scmp.ne.s32.totalorder %s114, %s115
      %p127 = scmp.eq.s32.totalorder %s21, 1
      %p128 = por %p126, %p127
      %p130 = scmp.ne.s32.totalorder %s115, %s129
      %p131 = scmp.eq.s32.totalorder %s21, 0
      %p132 = por %p130, %p131
      %s134 = sadd.s32 %s133, 1
      %p137 = scmp.eq.s32.totalorder %s15, 1
      %p138 = scmp.ne.s32.totalorder %s133, %s135
      %p139 = scmp.eq.s32.totalorder %s15, 0
      %p140 = por %p138, %p139
      %p141 = scmp.ne.s32.totalorder %s133, %s135
      %p142 = scmp.eq.s32.totalorder %s20, 1
      %p143 = por %p141, %p142
      %p144 = scmp.ne.s32.totalorder %s135, %s136
      %p145 = scmp.eq.s32.totalorder %s20, 0
      %p146 = por %p144, %p145
      %p147 = scmp.ne.s32.totalorder %s135, %s136
      %p148 = scmp.eq.s32.totalorder %s21, 1
      %p149 = por %p147, %p148
      %p151 = scmp.ne.s32.totalorder %s136, %s150
      %p152 = scmp.eq.s32.totalorder %s21, 0
      %p153 = por %p151, %p152
      %s154 = ssub.s32 %s15, %s22
      %p155 = scmp.eq.s32.totalorder %s154, 0
      %s157 = sadd.s32 %s156, 1
      %s158 = scalar_select %p155, %s156, %s157
      %p161 = pneg %p155
      %p162 = scmp.eq.s32.totalorder %s15, 1
      %p163 = por %p161, %p162
      %p164 = scmp.ne.s32.totalorder %s156, %s159
      %p165 = scmp.eq.s32.totalorder %s15, 0
      %p166 = por %p164, %p165
      %p167 = scmp.ne.s32.totalorder %s156, %s159
      %p168 = scmp.eq.s32.totalorder %s20, 1
      %p169 = por %p167, %p168
      %p170 = scmp.ne.s32.totalorder %s159, %s160
      %p171 = scmp.eq.s32.totalorder %s20, 0
      %p172 = por %p170, %p171
      %p173 = scmp.ne.s32.totalorder %s159, %s160
      %p174 = scmp.eq.s32.totalorder %s21, 1
      %p175 = por %p173, %p174
      %p177 = scmp.ne.s32.totalorder %s160, %s176
      %p178 = scmp.eq.s32.totalorder %s21, 0
      %p179 = por %p177, %p178
      %p180 = scmp.le.s32.totalorder 1, %s15
      %p181 = scmp.lt.s32.totalorder %s15, 3
      %p182 = pnand %p180, %p181
      %p183 = pneg %p182
      // Predicated region
      $region9: #{constraint_screening_forward.1} parent=5 // pred_check
        _
      $region10: #{constraint_screening_forward.1} parent=5 // pred_check_branch
        %185 = sbr.rel (%p182) target = $region12
      $region11: #{constraint_screening_forward.1} parent=5 // pred_region
        %s186 = ssub.s32 %s15, 1
        // Predicated region
        $region13: #{constraint_screening_forward.1} parent=11 // pred_check
          %p187 = pneg %p62
        $region14: #{constraint_screening_forward.1} parent=11 // pred_check_branch
          %189 = sbr.rel (%p187) target = $region16
        $region15: #{constraint_screening_forward.1} parent=11 // pred_region
          _
        $region16: #{constraint_screening_forward.1} parent=11 // pred_fallthru
          _
        // Predicated region
        $region17: #{constraint_screening_forward.1} parent=11 // pred_check
          %p190 = pneg %p83
        $region18: #{constraint_screening_forward.1} parent=11 // pred_check_branch
          %192 = sbr.rel (%p190) target = $region20
        $region19: #{constraint_screening_forward.1} parent=11 // pred_region
          _
        $region20: #{constraint_screening_forward.1} parent=11 // pred_fallthru
          _
        // Predicated region
        $region21: #{constraint_screening_forward.1} parent=11 // pred_check
          %p193 = pneg %p104
        $region22: #{constraint_screening_forward.1} parent=11 // pred_check_branch
          %195 = sbr.rel (%p193) target = $region24
        $region23: #{constraint_screening_forward.1} parent=11 // pred_region
          _
        $region24: #{constraint_screening_forward.1} parent=11 // pred_fallthru
          _
        // Predicated region
        $region25: #{constraint_screening_forward.1} parent=11 // pred_check
          %p196 = pneg %p125
        $region26: #{constraint_screening_forward.1} parent=11 // pred_check_branch
          %198 = sbr.rel (%p196) target = $region28
        $region27: #{constraint_screening_forward.1} parent=11 // pred_region
          _
        $region28: #{constraint_screening_forward.1} parent=11 // pred_fallthru
          _
        // Predicated region
        $region29: #{constraint_screening_forward.1} parent=11 // pred_check
          %p199 = pneg %p146
        $region30: #{constraint_screening_forward.1} parent=11 // pred_check_branch
          %201 = sbr.rel (%p199) target = $region32
        $region31: #{constraint_screening_forward.1} parent=11 // pred_region
          _
        $region32: #{constraint_screening_forward.1} parent=11 // pred_fallthru
          _
      $region12: #{constraint_screening_forward.1} parent=5 // pred_fallthru
        _
      %p202 = scmp.lt.s32.totalorder %s15, 2
      // Predicated region
      $region33: #{constraint_screening_forward.1} parent=5 // pred_check
        %p203 = pneg %p202
      $region34: #{constraint_screening_forward.1} parent=5 // pred_check_branch
        %205 = sbr.rel (%p203) target = $region36
      $region35: #{constraint_screening_forward.1} parent=5 // pred_region
        // Predicated region
        $region37: #{constraint_screening_forward.1} parent=35 // pred_check
          %p206 = pneg %p35
        $region38: #{constraint_screening_forward.1} parent=35 // pred_check_branch
          %208 = sbr.rel (%p206) target = $region40
        $region39: #{constraint_screening_forward.1} parent=35 // pred_region
          %p209 = scmp.lt.s32.totalorder %s15, 1
          %s210 = scalar_select %p209, %s15, 1
          %s211 = smul.addr %s210, 8
          %s212 = scalar_lea.vmem %s0, %s211
        $region40: #{constraint_screening_forward.1} parent=35 // pred_fallthru
          _
      $region36: #{constraint_screening_forward.1} parent=5 // pred_fallthru
        _
      %p213 = scmp.le.s32.totalorder 1, %s15
      %p214 = scmp.lt.s32.totalorder %s15, 3
      %p215 = pnand %p213, %p214
      %p216 = pneg %p215
      // Predicated region
      $region41: #{constraint_screening_forward.1} parent=5 // pred_check
        _
      $region42: #{constraint_screening_forward.1} parent=5 // pred_check_branch
        %218 = sbr.rel (%p215) target = $region44
      $region43: #{constraint_screening_forward.1} parent=5 // pred_region
        %s219 = ssub.s32 %s15, 1
        %p220 = scmp.lt.s32.totalorder %s20, 1
        %s221 = scalar_select %p220, %s20, 1
        %s222 = smul.addr %s221, 8
        %s223 = scalar_lea.vmem %s0, %s222
        %p224 = pneg %p41
        %p225 = pneg %p38
        %p226 = pneg %p62
        %p227 = pneg %p59
        %p228 = pneg %p83
        %p229 = pneg %p80
        %p230 = pneg %p104
        %p231 = pneg %p101
        %p232 = pneg %p125
        %p233 = pneg %p122
        %p234 = pneg %p146
        %p235 = pneg %p143
        %p236 = pneg %p172
        %p237 = pneg %p169
        %s238 = sand.u32 %s159, 1
        %s239 = scalar_lea.sflag [#allocation3], %s238
        %s240 = sand.u32 %s159, 1
        %s241 = smul.addr %s240, 8
        %s242 = scalar_lea.vmem [#allocation2], %s241
        %p243 = scmp.lt.s32.totalorder %s20, 1
        %s244 = scalar_select %p243, %s20, 1
        %s245 = smul.addr %s244, 8
        %s246 = scalar_lea.vmem %s0, %s245
        %v248 = vld [vmem:[%s246] sm:$0xff]
        %v249 = vpack.c.bf16 %v248, %v248
        %v250 = vld [vmem:[%s1] sm:$0xf]
        %v251 = vld [vmem:[%s1 + $0x4] sm:$0xf]
        %v252 = vld [vmem:[%s1 + $0x8] sm:$0xf]
        %v253 = vld [vmem:[%s1 + $0xc] sm:$0xf]
        %v254 = vld [vmem:[%s5] sm:$0x1]
        %v256 = vperm.slane %v254, 0
        %v262 = vunpack.c.l.b16 %v250
        %v263 = vunpack.c.l.b16 %v251
        %v264 = vunpack.c.l.b16 %v252
        %v265 = vunpack.c.l.b16 %v253
        %v266 = vpack.c.b16 %v263, %v262
        %v267 = vpack.c.b16 %v265, %v264
        %vm270 = vcmask 261120
        %v272 = vsel %vm270, %v249, 0
        %274 = vmatpush.bf16.msra.mxu0 0
        %275 = vmatpush.bf16.msra.mxu0 0
        %276 = vmatpush.bf16.msra.mxu0 0
        %277 = vmatpush.bf16.msra.mxu0 0
        %278 = vmatpush.bf16.msra.mxu0 0
        %279 = vmatpush.bf16.msra.mxu0 0
        %280 = vmatpush.bf16.msra.mxu0 %v267
        %281 = vmatpush.bf16.msra.mxu0 %v266
        %282 = vmatmul.bf16.gmra.mxu0 %v272
        %v283 = vpop.f32.mrf.mxu0
        %v284 = vadd.f32 %v256, %v283
        %v285 = vpop.f32.mrf.mxu0
        %286 = vdwg.mxu0
        %v287 = vmax.f32 %v284, 0.0
        %v288 = vpack.c.bf16 %v287, %v287
        %v289 = vld [vmem:[%s2] sm:$0xf]
        %v290 = vld [vmem:[%s2 + $0x4] sm:$0xf]
        %v291 = vld [vmem:[%s2 + $0x8] sm:$0xf]
        %v292 = vld [vmem:[%s2 + $0xc] sm:$0xf]
        %v293 = vld [vmem:[%s2 + $0x10] sm:$0xf]
        %v294 = vld [vmem:[%s2 + $0x14] sm:$0xf]
        %v295 = vld [vmem:[%s2 + $0x18] sm:$0xf]
        %v296 = vld [vmem:[%s2 + $0x1c] sm:$0xf]
        %v297 = vld [vmem:[%s5 + $0x1] sm:$0x1]
        %v299 = vperm.slane %v297, 0
        %v309 = vunpack.c.l.b16 %v289
        %v310 = vunpack.c.l.b16 %v290
        %v311 = vunpack.c.l.b16 %v291
        %v312 = vunpack.c.l.b16 %v292
        %v313 = vunpack.c.l.b16 %v293
        %v314 = vunpack.c.l.b16 %v294
        %v315 = vunpack.c.l.b16 %v295
        %v316 = vunpack.c.l.b16 %v296
        %v317 = vpack.c.b16 %v310, %v309
        %v318 = vpack.c.b16 %v312, %v311
        %v319 = vpack.c.b16 %v314, %v313
        %v320 = vpack.c.b16 %v316, %v315
        %vm325 = vcmask 523264
        %v327 = vsel %vm325, %v288, 0
        %329 = vmatpush.bf16.msra.mxu0 0
        %330 = vmatpush.bf16.msra.mxu0 0
        %331 = vmatpush.bf16.msra.mxu0 0
        %332 = vmatpush.bf16.msra.mxu0 0
        %333 = vmatpush.bf16.msra.mxu0 %v320
        %334 = vmatpush.bf16.msra.mxu0 %v319
        %335 = vmatpush.bf16.msra.mxu0 %v318
        %336 = vmatpush.bf16.msra.mxu0 %v317
        %337 = vmatmul.bf16.gmra.mxu0 %v327
        %v338 = vpop.f32.mrf.mxu0
        %v339 = vadd.f32 %v299, %v338
        %v340 = vpop.f32.mrf.mxu0
        %341 = vdwg.mxu0
        %v342 = vmax.f32 %v339, 0.0
        %v343 = vpack.c.bf16 %v342, %v342
        %v344 = vld [vmem:[%s3] sm:$0xf]
        %v345 = vld [vmem:[%s3 + $0x4] sm:$0xf]
        %v346 = vld [vmem:[%s3 + $0x8] sm:$0xf]
        %v347 = vld [vmem:[%s3 + $0xc] sm:$0xf]
        %v348 = vld [vmem:[%s3 + $0x10] sm:$0xf]
        %v349 = vld [vmem:[%s3 + $0x14] sm:$0xf]
        %v350 = vld [vmem:[%s3 + $0x18] sm:$0xf]
        %v351 = vld [vmem:[%s3 + $0x1c] sm:$0xf]
        %v352 = vld [vmem:[%s3 + $0x20] sm:$0xf]
        %v353 = vld [vmem:[%s3 + $0x24] sm:$0xf]
        %v354 = vld [vmem:[%s3 + $0x28] sm:$0xf]
        %v355 = vld [vmem:[%s3 + $0x2c] sm:$0xf]
        %v356 = vld [vmem:[%s3 + $0x30] sm:$0xf]
        %v357 = vld [vmem:[%s3 + $0x34] sm:$0xf]
        %v358 = vld [vmem:[%s3 + $0x38] sm:$0xf]
        %v359 = vld [vmem:[%s3 + $0x3c] sm:$0xf]
        %v360 = vld [vmem:[%s5 + $0x2] sm:$0x1]
        %v362 = vperm.slane %v360, 0
        %v380 = vunpack.c.l.b16 %v344
        %v381 = vunpack.c.l.b16 %v345
        %v382 = vunpack.c.l.b16 %v346
        %v383 = vunpack.c.l.b16 %v347
        %v384 = vunpack.c.l.b16 %v348
        %v385 = vunpack.c.l.b16 %v349
        %v386 = vunpack.c.l.b16 %v350
        %v387 = vunpack.c.l.b16 %v351
        %v388 = vunpack.c.l.b16 %v352
        %v389 = vunpack.c.l.b16 %v353
        %v390 = vunpack.c.l.b16 %v354
        %v391 = vunpack.c.l.b16 %v355
        %v392 = vunpack.c.l.b16 %v356
        %v393 = vunpack.c.l.b16 %v357
        %v394 = vunpack.c.l.b16 %v358
        %v395 = vunpack.c.l.b16 %v359
        %v396 = vpack.c.b16 %v381, %v380
        %v397 = vpack.c.b16 %v383, %v382
        %v398 = vpack.c.b16 %v385, %v384
        %v399 = vpack.c.b16 %v387, %v386
        %v400 = vpack.c.b16 %v389, %v388
        %v401 = vpack.c.b16 %v391, %v390
        %v402 = vpack.c.b16 %v393, %v392
        %v403 = vpack.c.b16 %v395, %v394
        %412 = vmatpush.bf16.msra.mxu0 %v403
        %413 = vmatpush.bf16.msra.mxu0 %v402
        %414 = vmatpush.bf16.msra.mxu0 %v401
        %415 = vmatpush.bf16.msra.mxu0 %v400
        %416 = vmatpush.bf16.msra.mxu0 %v399
        %417 = vmatpush.bf16.msra.mxu0 %v398
        %418 = vmatpush.bf16.msra.mxu0 %v397
        %419 = vmatpush.bf16.msra.mxu0 %v396
        %420 = vmatmul.bf16.gmra.mxu0 %v343
        %v421 = vpop.f32.mrf.mxu0
        %v422 = vadd.f32 %v362, %v421
        %v423 = vpop.f32.mrf.mxu0
        %424 = vdwg.mxu0
        %v425 = vmax.f32 %v422, 0.0
        %v426 = vpack.c.bf16 %v425, %v425
        %v427 = vld [vmem:[%s4] sm:$0xf]
        %v428 = vld [vmem:[%s4 + $0x4] sm:$0xf]
        %v429 = vld [vmem:[%s4 + $0x8] sm:$0xf]
        %v430 = vld [vmem:[%s4 + $0xc] sm:$0xf]
        %v431 = vld [vmem:[%s4 + $0x10] sm:$0xf]
        %v432 = vld [vmem:[%s4 + $0x14] sm:$0xf]
        %v433 = vld [vmem:[%s4 + $0x18] sm:$0xf]
        %v434 = vld [vmem:[%s4 + $0x1c] sm:$0xf]
        %v435 = vld [vmem:[%s5 + $0x3] sm:$0x1]
        %v437 = vperm.slane %v435, 0
        %v447 = vunpack.c.l.b16 %v427
        %v448 = vunpack.c.l.b16 %v428
        %v449 = vunpack.c.l.b16 %v429
        %v450 = vunpack.c.l.b16 %v430
        %v451 = vunpack.c.l.b16 %v431
        %v452 = vunpack.c.l.b16 %v432
        %v453 = vunpack.c.l.b16 %v433
        %v454 = vunpack.c.l.b16 %v434
        %v455 = vpack.c.b16 %v448, %v447
        %v456 = vpack.c.b16 %v450, %v449
        %v457 = vpack.c.b16 %v452, %v451
        %v458 = vpack.c.b16 %v454, %v453
        %v464 = vsel %vm325, %v426, 0
        %466 = vmatpush.bf16.msra.mxu0 0
        %467 = vmatpush.bf16.msra.mxu0 0
        %468 = vmatpush.bf16.msra.mxu0 0
        %469 = vmatpush.bf16.msra.mxu0 0
        %470 = vmatpush.bf16.msra.mxu0 %v458
        %471 = vmatpush.bf16.msra.mxu0 %v457
        %472 = vmatpush.bf16.msra.mxu0 %v456
        %473 = vmatpush.bf16.msra.mxu0 %v455
        %474 = vmatmul.bf16.gmra.mxu0 %v464
        %v475 = vpop.f32.mrf.mxu0
        %v476 = vadd.f32 %v437, %v475
        %v477 = vpop.f32.mrf.mxu0
        %478 = vdwg.mxu0
        %v479 = vxor.u32 %v476, 2147483648
        %v480 = vmul.f32 %v479, 1.442695
        %v481 = vpow.pop %v480
        %v482 = vadd.f32 %v481, 1.0
        %v483 = vrcp.pop %v482
        %v484 = vmul.f32 %v482, %v483
        %v485 = vsub.f32 1.0, %v484
        %v486 = vmul.f32 %v483, %v485
        %v487 = vadd.f32 %v483, %v486
        %vm488 = vweird.f32 %v482
        %vm489 = vweird.f32 %v483
        %vm490 = vmor %vm488, %vm489
        %v491 = vsel %vm490, %v483, %v487
        %v492 = vand.u32 2147483647, %v482
        %vm493 = vcmp.eq.f32.partialorder %v492, 8.507059e+37
        %v494 = vand.u32 %v482, 2147483648
        %v495 = vor.u32 1.1754944e-38, %v494
        %v496 = vsel %vm493, %v495, %v491
        %v497 = vmul.f32 1.0, %v496
        %vm498 = vcmask 130048
        %499 = vst.msk [vmem:[%s242] sm:$0xff] %vm498, %v497
        %s500 = sand.u32 %s159, 1
        %s501 = scalar_lea.sflag [#allocation3], %s500
        %s502 = sand.u32 %s159, 1
        %s503 = smul.addr %s502, 8
        %s504 = scalar_lea.vmem [#allocation2], %s503
        // Predicated region
        $region45: #{constraint_screening_forward.1} parent=43 // pred_check
          %p505 = pneg %p169
        $region46: #{constraint_screening_forward.1} parent=43 // pred_check_branch
          %507 = sbr.rel (%p505) target = $region48
        $region47: #{constraint_screening_forward.1} parent=43 // pred_region
          %509 = vsyncadd %s501, 0
          %s510 = smul.addr %s20, 8
          %s511 = scalar_lea.hbm %s6, %s510
          %s513 = sshll.u32 %s504, 4
          %s514 = int_to_ptr.vmem [resolvable:$true] %s513
          %s515 = sshll.u32 %s511, 4
          %s516 = int_to_ptr.hbm [resolvable:$true] %s515
          %518 = dma.vmem_to_hbm [thread:$0]  %s514, 128, %s516, %s501
        $region48: #{constraint_screening_forward.1} parent=43 // pred_fallthru
          _
      $region44: #{constraint_screening_forward.1} parent=5 // pred_fallthru
        _
      %p519 = scmp.le.s32.totalorder 2, %s15
      // Predicated region
      $region49: #{constraint_screening_forward.1} parent=5 // pred_check
        %p520 = pneg %p519
      $region50: #{constraint_screening_forward.1} parent=5 // pred_check_branch
        %522 = sbr.rel (%p520) target = $region52
      $region51: #{constraint_screening_forward.1} parent=5 // pred_region
        %s523 = ssub.s32 %s15, 2
        // Predicated region
        $region53: #{constraint_screening_forward.1} parent=51 // pred_check
          %p524 = pneg %p175
        $region54: #{constraint_screening_forward.1} parent=51 // pred_check_branch
          %526 = sbr.rel (%p524) target = $region56
        $region55: #{constraint_screening_forward.1} parent=51 // pred_region
          %s527 = sand.u32 %s160, 1
          %s528 = scalar_lea.sflag [#allocation3], %s527
          %s529 = sand.u32 %s160, 1
          %s530 = smul.addr %s529, 8
          %s531 = scalar_lea.vmem [#allocation2], %s530
          %533 = dma.done %s528, 128
        $region56: #{constraint_screening_forward.1} parent=51 // pred_fallthru
          _
      $region52: #{constraint_screening_forward.1} parent=5 // pred_fallthru
        _
    $region6: #{constraint_screening_forward.1} parent=1 // loop_footer
      %s19 = sadd.s32 1, %s15
    $region7: #{constraint_screening_forward.1} parent=1 // loop_footer_branch
      %14 = sbr.rel target = $region3
    $region8: #{constraint_screening_forward.1} parent=1 // loop_exit
      _
    %534 = vsyncpa [#allocation3], 1
    %s535 = scalar_lea.sflag [#allocation3], 1
    %536 = vsyncpa %s535, 1

</llo_original>
